<compile_context>
chip_gen: v7x
topology: tpu7x:2x2x1
jax: 0.10.0
libtpu: 0.0.40
codegen_flags: <defaults>
</compile_context>

<pallas_src>
import jax
import jax.numpy as jnp
from jax.experimental import pallas as pl
from jax.experimental.pallas import tpu as pltpu


def _pos_embed_kernel(x_ref, bias_ref, o_ref):
    # x_ref:    (tb, LE) tile of flattened session embeddings
    # bias_ref: (1, LE)  pre-broadcast bias row (resident across grid steps)
    # o_ref:    (tb, LE)
    # (1, LE) broadcasts across the tb sublane rows -> cheap sublane broadcast.
    o_ref[...] = x_ref[...] + bias_ref[...]


def _choose_row_block(batch: int, row_bytes: int, target_bytes: int = 8 << 20) -> int:
    """Rows per tile: multiple of 8, ~<=8 MiB tiles, even #steps when possible."""
    rows = max(8, (target_bytes // max(row_bytes, 1)) // 8 * 8)
    # TODO(synk): for extremely wide rows (8 * row_bytes >> target) also tile
    # along the LE axis in multiples of 128 instead of growing the tile.
    if batch <= rows:
        return batch  # single full block (block dims == array dims -> always legal)
    nb = -(-batch // rows)  # cdiv
    if nb % 2 == 1:
        # Prefer an even number of grid steps so both v7x TensorCores get
        # equal work under the "parallel" dimension semantics.
        tb2 = ((-(-batch // (nb + 1)) + 7) // 8) * 8
        if tb2 >= 8 and (-(-batch // tb2)) % 2 == 0:
            return tb2
    return rows


def position_embedding(session_embed_inputs: jax.Array,
                       bias: jax.Array,
                       *,
                       donate_input: bool = False) -> jax.Array:
    """session_embed_inputs: (B, L, E); bias: (1, L, 1) -> (B, L, E)."""
    B, L, E = session_embed_inputs.shape
    assert bias.shape == (1, L, 1)
    LE = L * E
    dtype = session_embed_inputs.dtype
    itemsize = jnp.dtype(dtype).itemsize

    # Lane-dense 2-D view: each batch row becomes a length-L*E vector.
    # TODO(synk): if LE is not a multiple of 128 and this layer stays
    # standalone, stores fall back to masked vst; padding E in the *producer*
    # (not an extra HBM round-trip here) would restore full-lane stores.
    x2 = session_embed_inputs.reshape(B, LE)

    # Pre-broadcast bias (1, L, 1) -> (1, L*E) once (L*E floats; negligible).
    # Note: bias is cast to the input dtype, so a bf16 input adds in bf16
    # (PyTorch would promote); exact for the stated f32 layer.
    bias_row = jnp.broadcast_to(bias.reshape(L, 1), (L, E)).reshape(1, LE).astype(dtype)

    tb = _choose_row_block(B, LE * itemsize)
    nb = pl.cdiv(B, tb)

    out = pl.pallas_call(
        _pos_embed_kernel,
        out_shape=jax.ShapeDtypeStruct((B, LE), dtype),
        grid_spec=pltpu.PrefetchScalarGridSpec(
            num_scalar_prefetch=0,
            grid=(nb,),
            in_specs=[
                pl.BlockSpec((tb, LE), lambda i: (i, 0)),
                # Constant index map: bias tile is fetched once and reused.
                pl.BlockSpec((1, LE), lambda i: (0, 0)),
            ],
            out_specs=pl.BlockSpec((tb, LE), lambda i: (i, 0)),
        ),
        compiler_params=pltpu.CompilerParams(
            dimension_semantics=("parallel",),
            # Double-buffered 8 MiB in + 8 MiB out (~32 MiB) + tiny bias fits
            # with headroom; safely under v7x's 64 MiB physical VMEM and lifts
            # v5e's 16 MiB default scoped limit.
            vmem_limit_bytes=48 << 20,
        ),
        cost_estimate=pl.CostEstimate(
            flops=B * LE,
            transcendentals=0,
            bytes_accessed=2 * B * LE * itemsize + LE * itemsize,
        ),
        # Only safe when the caller donates the input buffer; otherwise XLA
        # inserts a defensive copy that costs an extra HBM pass.
        input_output_aliases=({0: 0} if donate_input else {}),
    )(x2, bias_row)

    return out.reshape(B, L, E)


if __name__ == "__main__":
    B, L, E = 2, 8, 32  # batch, max_num_position (sequence length), embed dim

    key = jax.random.PRNGKey(0)
    k_x, k_b = jax.random.split(key)

    x = jax.random.normal(k_x, (B, L, E), dtype=jnp.float32)
    # nn.init.normal_(self.bias) -> standard normal, deterministic here
    bias = jax.random.normal(k_b, (1, L, 1), dtype=jnp.float32)

    out = position_embedding(x, bias)
    out = jax.block_until_ready(out)

    # correctness check against plain-JAX reference
    ref = x + bias
    assert out.shape == (B, L, E)
    assert jnp.allclose(out, ref, atol=1e-6), "mismatch vs reference"

    print("KERNEL_OK")
</pallas_src>

<mosaic_0001>
module attributes {stable_mosaic.version = 11 : i64} {
  func.func @_pos_embed_kernel(%arg0: i32, %arg1: memref<2x256xf32, #tpu.memory_space<vmem>>, %arg2: memref<1x256xf32, #tpu.memory_space<vmem>>, %arg3: memref<2x256xf32, #tpu.memory_space<vmem>>) attributes {dimension_semantics = [#tpu.dimension_semantics<parallel>], iteration_bounds = array<i64: 1>, scalar_prefetch = 0 : i64, scratch_operands = 0 : i64, tpu.core_type = #tpu.core_type<tc>, window_params = [{transform_indices = @transform_0, window_bounds = array<i64: 2, 256>}, {pipeline_mode = #tpu.pipeline_mode<synchronous>, transform_indices = @transform_1, window_bounds = array<i64: 1, 256>}, {transform_indices = @transform_2, window_bounds = array<i64: 2, 256>}]} {
    %c0 = arith.constant 0 : index
    %c0_0 = arith.constant 0 : index
    %0 = vector.load %arg1[%c0, %c0_0] : memref<2x256xf32, #tpu.memory_space<vmem>>, vector<2x256xf32>
    %c0_1 = arith.constant 0 : index
    %c0_2 = arith.constant 0 : index
    %1 = vector.load %arg2[%c0_1, %c0_2] : memref<1x256xf32, #tpu.memory_space<vmem>>, vector<1x256xf32>
    %2 = vector.broadcast %1 : vector<1x256xf32> to vector<2x256xf32>
    %3 = arith.addf %0, %2 : vector<2x256xf32>
    %c0_3 = arith.constant 0 : index
    %c0_4 = arith.constant 0 : index
    %4 = vector.load %arg3[%c0_3, %c0_4] : memref<2x256xf32, #tpu.memory_space<vmem>>, vector<2x256xf32>
    tpu.vector_store %arg3[%c0_3, %c0_4], %3 {strides = array<i32>} : memref<2x256xf32, #tpu.memory_space<vmem>>, vector<2x256xf32>,
    return
  }
  func.func @transform_0(%arg0: i32) -> (i32, i32) {
    %c0_i32 = arith.constant 0 : i32
    %c0_i32_0 = arith.constant 0 : i32
    return %arg0, %c0_i32 : i32, i32
  }
  func.func @transform_1(%arg0: i32) -> (i32, i32) {
    %c0_i32 = arith.constant 0 : i32
    %c0_i32_0 = arith.constant 0 : i32
    %c0_i32_1 = arith.constant 0 : i32
    return %c0_i32, %c0_i32_0 : i32, i32
  }
  func.func @transform_2(%arg0: i32) -> (i32, i32) {
    %c0_i32 = arith.constant 0 : i32
    %c0_i32_0 = arith.constant 0 : i32
    return %arg0, %c0_i32 : i32, i32
  }
}

</mosaic_0001>

<llo_original>
// kernel: tpu_custom_call.1
$region0: #{tpu_custom_call.1}
  #allocation0 [shape = 'u32[]', space=smem, size = 0x4, offset = 0x4, fixed_abs, tag = 'smem constant byte address 0x4 - core index']
  #allocation1 [shape = 'u32[144,128]{1,0:T(1,128)}', space=vmem, size = 0x12000, scoped, tag = 'internal scratch']
  %s0 = inlined_call_operand.hbm [shape: f32[2,256], index: 0, kind: input, shape index: {}]
  %s1 = inlined_call_operand.vmem [shape: f32[1,256], index: 1, kind: input, shape index: {}]
  %s2 = inlined_call_operand.hbm [shape: f32[2,256], index: 2, kind: output, shape index: {}]
  %s3 = sld [smem:[#allocation0]]
  $region22: #{tpu_custom_call.1} parent=0
    _
  %s5 = ssub.s32 1, %s3
  %s6 = scalar_select 0, %s5, %s3
  $region1: #{tpu_custom_call.1} parent=0
    #allocation2 [shape = 'u8[2048]{0}', space=vmem, size = 0x800, scoped, tag = 'input window, operand 0, single buffered']
    #allocation3 [shape = 's32[1]{0}', space=sflag, size = 0x4, scoped, tag = 'scoped memory for tpu_custom_call.1']
    #allocation4 [shape = 's32[1]{0}', space=sflag, size = 0x4, scoped, tag = 'scoped memory for tpu_custom_call.1']
    #allocation5 [shape = 'u8[2048]{0}', space=vmem, size = 0x800, scoped, tag = 'output window, operand 0, single buffered']
    %7 = vsyncpa [#allocation3], 0
    %8 = vsyncpa [#allocation4], 0
    // Predicated region
    $region2: #{tpu_custom_call.1} parent=1 // pred_check
      _
    $region3: #{tpu_custom_call.1} parent=1 // pred_check_branch
      %10 = sbr.rel (0) target = $region5
    $region4: #{tpu_custom_call.1} parent=1 // pred_region
      %s12 = ssub.s32 64, 64
      %13 = vsyncadd [#allocation3], %s12
      %s15 = sshll.u32 [#allocation2], 4
      %s16 = int_to_ptr.vmem [resolvable:$true] %s15
      %18 = dma.hbm_to_vmem [thread:$0]  %s0, 64, %s16, [#allocation3]
    $region5: #{tpu_custom_call.1} parent=1 // pred_fallthru
      _
    // Predicated region
    $region6: #{tpu_custom_call.1} parent=1 // pred_check
      _
    $region7: #{tpu_custom_call.1} parent=1 // pred_check_branch
      %20 = sbr.rel (0) target = $region9
    $region8: #{tpu_custom_call.1} parent=1 // pred_region
      _
    $region9: #{tpu_custom_call.1} parent=1 // pred_fallthru
      _
    // Predicated region
    $region10: #{tpu_custom_call.1} parent=1 // pred_check
      _
    $region11: #{tpu_custom_call.1} parent=1 // pred_check_branch
      %22 = sbr.rel (0) target = $region13
    $region12: #{tpu_custom_call.1} parent=1 // pred_region
      %23 = dma.done [#allocation3], 64
    $region13: #{tpu_custom_call.1} parent=1 // pred_fallthru
      _
    %v24 = vld [vmem:[#allocation2] sm:$0xf]
    %v25 = vld [vmem:[%s1] sm:$0x3]
    %v27 = vlaneseq
    %v28 = vshrl.u32 %v27, 7
    %v29 = vsub.s32 0, %v28
    %v30 = vrot.slane %v25, %v29
    %v31 = vlaneseq
    %v32 = vshrl.u32 %v31, 7
    %v33 = vsub.s32 1, %v32
    %v34 = vrot.slane %v25, %v33
    %v35 = vcombine.low %v30, %v34
    %v37 = vunpack.c.l.s4 1983009808
    %v38 = vunpack.c.0.s8 %v37
    %v39 = vlaneseq
    %v40 = vshrl.u32 %v39, 7
    %v41 = vsub.s32 %v38, %v40
    %v42 = vrot.slane %v35, %v41
    %v44 = vadd.f32 %v24, %v42
    %45 = vst [vmem:[#allocation5] sm:$0xf] %v44
    // Predicated region
    $region14: #{tpu_custom_call.1} parent=1 // pred_check
      _
    $region15: #{tpu_custom_call.1} parent=1 // pred_check_branch
      %47 = sbr.rel (0) target = $region17
    $region16: #{tpu_custom_call.1} parent=1 // pred_region
      %s49 = ssub.s32 64, 64
      %50 = vsyncadd [#allocation4], %s49
      %s52 = sshll.u32 [#allocation5], 4
      %s53 = int_to_ptr.vmem [resolvable:$true] %s52
      %55 = dma.vmem_to_hbm [thread:$0]  %s53, 64, %s2, [#allocation4]
    $region17: #{tpu_custom_call.1} parent=1 // pred_fallthru
      _
    // Predicated region
    $region18: #{tpu_custom_call.1} parent=1 // pred_check
      _
    $region19: #{tpu_custom_call.1} parent=1 // pred_check_branch
      %57 = sbr.rel (0) target = $region21
    $region20: #{tpu_custom_call.1} parent=1 // pred_region
      %58 = dma.done [#allocation4], 64
    $region21: #{tpu_custom_call.1} parent=1 // pred_fallthru
      _
    %59 = vsyncpa [#allocation3], 1
    %60 = vsyncpa [#allocation4], 1

</llo_original>
